<compile_context>
chip_gen: v5e
topology: v5e:2x2
jax: 0.10.0
libtpu: 0.0.40
codegen_flags: <defaults>
</compile_context>

<pallas_src>
import functools

import jax
import jax.numpy as jnp
from jax.experimental import pallas as pl
from jax.experimental.pallas import tpu as pltpu

_LANES = 128
_SUBLANES = 8


def _focal_loss_kernel(pred_ref, label_ref, out_ref, *, gamma, alpha):
    """One (tile_rows, 128) tile per grid step; writes an (8,128) partial sum."""
    x = pred_ref[...].astype(jnp.float32)   # logits
    y = label_ref[...].astype(jnp.float32)  # targets

    # Shared transcendental: e = exp(-|x|) feeds both the stable BCE log term
    # and the sigmoid.
    e = jnp.exp(-jnp.abs(x))
    inv_1pe = 1.0 / (1.0 + e)

    # binary_cross_entropy_with_logits, reduction='none' (numerically stable)
    bce = jnp.maximum(x, 0.0) - x * y + jnp.log1p(e)

    # sigmoid(x) = 1/(1+e) for x>=0, e/(1+e) for x<0
    p = jnp.where(x >= 0.0, 1.0, e) * inv_1pe

    # 1 - p_t  where  p_t = y*p + (1-y)*(1-p)   (fused linear form)
    one_m = p + y * (1.0 - 2.0 * p)
    if gamma == 1.5:
        # (1 - p_t)**1.5 == (1 - p_t) * sqrt(1 - p_t)  (safe at 0, cheap on EUP)
        mod = one_m * jnp.sqrt(one_m)
    else:
        mod = jnp.power(one_m, jnp.float32(gamma))
    loss = bce * mod

    if alpha > 0:
        # y*alpha + (1-y)*(1-alpha) == (1-alpha) + y*(2*alpha-1)
        loss = loss * ((1.0 - alpha) + y * (2.0 * alpha - 1.0))

    # Reduce only across vregs (leading axis): pure VPU adds, no XLU, no SMEM.
    rows = loss.shape[0]
    out_ref[0] = loss.reshape(rows // _SUBLANES, _SUBLANES, _LANES).sum(axis=0)


def focal_loss(pred, label, gamma=1.5, alpha=0.25, *, tile_rows=4096):
    """Pallas wrapper: pred/label are (N, C); returns a scalar float32."""
    N, C = pred.shape
    total = N * C

    # Lane-dense view: pad flat length up to a multiple of (tile_rows * 128).
    rows_needed = pl.cdiv(total, _LANES)
    rows_needed = ((rows_needed + _SUBLANES - 1) // _SUBLANES) * _SUBLANES
    tr = max(_SUBLANES, (min(tile_rows, rows_needed) // _SUBLANES) * _SUBLANES)
    padded_rows = ((rows_needed + tr - 1) // tr) * tr
    padded_total = padded_rows * _LANES

    x = pred.reshape(-1)
    y = label.reshape(-1)
    pad = padded_total - total
    if pad:
        # Neutral pad: x very negative with y=0 contributes ~1e-33 per element.
        x = jnp.concatenate([x, jnp.full((pad,), -30.0, x.dtype)])
        y = jnp.concatenate([y, jnp.zeros((pad,), y.dtype)])
    x2 = x.reshape(padded_rows, _LANES)
    y2 = y.reshape(padded_rows, _LANES)

    grid = padded_rows // tr
    kernel = functools.partial(_focal_loss_kernel, gamma=gamma, alpha=alpha)

    partials = pl.pallas_call(
        kernel,
        out_shape=jax.ShapeDtypeStruct((grid, _SUBLANES, _LANES), jnp.float32),
        grid=(grid,),
        in_specs=[
            pl.BlockSpec((tr, _LANES), lambda i: (i, 0)),
            pl.BlockSpec((tr, _LANES), lambda i: (i, 0)),
        ],
        out_specs=pl.BlockSpec((1, _SUBLANES, _LANES), lambda i: (i, 0, 0)),
        compiler_params=pltpu.CompilerParams(
            dimension_semantics=("parallel",),  # independent tiles -> megacore OK
            vmem_limit_bytes=32 * 1024 * 1024,
        ),
    )(x2, y2)

    # Single final reduction + the /C of loss.mean(1).sum().
    return jnp.sum(partials) / jnp.float32(C)


def _focal_loss_ref(pred, label, gamma=1.5, alpha=0.25):
    """Pure-JAX reference mirroring the PyTorch module."""
    x = pred.astype(jnp.float32)
    y = label.astype(jnp.float32)
    bce = jnp.maximum(x, 0.0) - x * y + jnp.log1p(jnp.exp(-jnp.abs(x)))
    p = jax.nn.sigmoid(x)
    p_t = y * p + (1.0 - y) * (1.0 - p)
    loss = bce * (1.0 - p_t) ** gamma
    if alpha > 0:
        loss = loss * (y * alpha + (1.0 - y) * (1.0 - alpha))
    return loss.mean(1).sum()


if __name__ == "__main__":
    key = jax.random.PRNGKey(0)
    k_pred, k_label = jax.random.split(key)

    # Small (batch, num_classes) problem; N*C is a multiple of 128.
    N, C = 16, 64
    pred = jax.random.normal(k_pred, (N, C), dtype=jnp.float32) * 2.0
    label = (jax.random.uniform(k_label, (N, C)) > 0.7).astype(jnp.float32)

    out = jax.block_until_ready(focal_loss(pred, label))
    ref = _focal_loss_ref(pred, label)
    assert jnp.allclose(out, ref, rtol=1e-4, atol=1e-5), (out, ref)

    # Exercise the padded-tail path (N*C not a multiple of 128, YOLO-ish C=80).
    N2, C2 = 5, 80
    pred2 = jax.random.normal(k_pred, (N2, C2), dtype=jnp.float32) * 2.0
    label2 = (jax.random.uniform(k_label, (N2, C2)) > 0.7).astype(jnp.float32)
    out2 = jax.block_until_ready(focal_loss(pred2, label2))
    ref2 = _focal_loss_ref(pred2, label2)
    assert jnp.allclose(out2, ref2, rtol=1e-4, atol=1e-5), (out2, ref2)

    print("KERNEL_OK")
</pallas_src>

<mosaic_0001>
module attributes {stable_mosaic.version = 11 : i64} {
  func.func @_focal_loss_kernel(%arg0: i32, %arg1: memref<8x128xf32, #tpu.memory_space<vmem>>, %arg2: memref<8x128xf32, #tpu.memory_space<vmem>>, %arg3: memref<1x8x128xf32, #tpu.memory_space<vmem>>) attributes {dimension_semantics = [#tpu.dimension_semantics<parallel>], iteration_bounds = array<i64: 1>, scalar_prefetch = 0 : i64, scratch_operands = 0 : i64, tpu.core_type = #tpu.core_type<tc>, window_params = [{transform_indices = @transform_0, window_bounds = array<i64: 8, 128>}, {transform_indices = @transform_1, window_bounds = array<i64: 8, 128>}, {transform_indices = @transform_2, window_bounds = array<i64: 1, 8, 128>}]} {
    %c0 = arith.constant 0 : index
    %c0_0 = arith.constant 0 : index
    %0 = vector.load %arg1[%c0, %c0_0] : memref<8x128xf32, #tpu.memory_space<vmem>>, vector<8x128xf32>
    %c0_1 = arith.constant 0 : index
    %c0_2 = arith.constant 0 : index
    %1 = vector.load %arg2[%c0_1, %c0_2] : memref<8x128xf32, #tpu.memory_space<vmem>>, vector<8x128xf32>
    %2 = math.absf %0 : vector<8x128xf32>
    %cst = arith.constant 0.000000e+00 : f32
    %3 = vector.broadcast %cst : f32 to vector<8x128xf32>
    %4 = arith.subf %3, %2 : vector<8x128xf32>
    %5 = math.exp %4 : vector<8x128xf32>
    %cst_3 = arith.constant 1.000000e+00 : f32
    %6 = vector.broadcast %cst_3 : f32 to vector<8x128xf32>
    %7 = arith.addf %6, %5 : vector<8x128xf32>
    %cst_4 = arith.constant 1.000000e+00 : f32
    %8 = vector.broadcast %cst_4 : f32 to vector<8x128xf32>
    %9 = arith.divf %8, %7 : vector<8x128xf32>
    %cst_5 = arith.constant 0.000000e+00 : f32
    %10 = vector.broadcast %cst_5 : f32 to vector<8x128xf32>
    %11 = arith.maximumf %0, %10 : vector<8x128xf32>
    %12 = arith.mulf %0, %1 : vector<8x128xf32>
    %13 = arith.subf %11, %12 : vector<8x128xf32>
    %14 = math.log1p %5 : vector<8x128xf32>
    %15 = arith.addf %13, %14 : vector<8x128xf32>
    %cst_6 = arith.constant 0.000000e+00 : f32
    %16 = vector.broadcast %cst_6 : f32 to vector<8x128xf32>
    %17 = arith.cmpf oge, %0, %16 : vector<8x128xf32>
    %cst_7 = arith.constant 1.000000e+00 : f32
    %18 = vector.broadcast %cst_7 : f32 to vector<8x128xf32>
    %19 = arith.select %17, %18, %5 : vector<8x128xi1>, vector<8x128xf32>
    %20 = arith.mulf %19, %9 : vector<8x128xf32>
    %cst_8 = arith.constant 2.000000e+00 : f32
    %21 = vector.broadcast %cst_8 : f32 to vector<8x128xf32>
    %22 = arith.mulf %21, %20 : vector<8x128xf32>
    %cst_9 = arith.constant 1.000000e+00 : f32
    %23 = vector.broadcast %cst_9 : f32 to vector<8x128xf32>
    %24 = arith.subf %23, %22 : vector<8x128xf32>
    %25 = arith.mulf %1, %24 : vector<8x128xf32>
    %26 = arith.addf %20, %25 : vector<8x128xf32>
    %27 = math.sqrt %26 : vector<8x128xf32>
    %28 = arith.mulf %26, %27 : vector<8x128xf32>
    %29 = arith.mulf %15, %28 : vector<8x128xf32>
    %cst_10 = arith.constant -5.000000e-01 : f32
    %30 = vector.broadcast %cst_10 : f32 to vector<8x128xf32>
    %31 = arith.mulf %1, %30 : vector<8x128xf32>
    %cst_11 = arith.constant 7.500000e-01 : f32
    %32 = vector.broadcast %cst_11 : f32 to vector<8x128xf32>
    %33 = arith.addf %32, %31 : vector<8x128xf32>
    %34 = arith.mulf %29, %33 : vector<8x128xf32>
    %35 = vector.shape_cast %34 : vector<8x128xf32> to vector<1x8x128xf32>
    %cst_12 = arith.constant dense<0.000000e+00> : vector<8x128xf32>
    %36 = vector.multi_reduction <add>, %35, %cst_12 [0] : vector<1x8x128xf32> to vector<8x128xf32>
    %c0_13 = arith.constant 0 : index
    %c0_14 = arith.constant 0 : index
    %c0_15 = arith.constant 0 : index
    %37 = vector.load %arg3[%c0_13, %c0_14, %c0_15] : memref<1x8x128xf32, #tpu.memory_space<vmem>>, vector<1x8x128xf32>
    %38 = vector.shape_cast %37 : vector<1x8x128xf32> to vector<8x128xf32>
    %39 = vector.shape_cast %36 : vector<8x128xf32> to vector<1x8x128xf32>
    tpu.vector_store %arg3[%c0_13, %c0_14, %c0_15], %39 {strides = array<i32>} : memref<1x8x128xf32, #tpu.memory_space<vmem>>, vector<1x8x128xf32>,
    return
  }
  func.func @transform_0(%arg0: i32) -> (i32, i32) {
    %c0_i32 = arith.constant 0 : i32
    %c0_i32_0 = arith.constant 0 : i32
    return %arg0, %c0_i32 : i32, i32
  }
  func.func @transform_1(%arg0: i32) -> (i32, i32) {
    %c0_i32 = arith.constant 0 : i32
    %c0_i32_0 = arith.constant 0 : i32
    return %arg0, %c0_i32 : i32, i32
  }
  func.func @transform_2(%arg0: i32) -> (i32, i32, i32) {
    %c0_i32 = arith.constant 0 : i32
    %c0_i32_0 = arith.constant 0 : i32
    %c0_i32_1 = arith.constant 0 : i32
    return %arg0, %c0_i32, %c0_i32_0 : i32, i32, i32
  }
}

</mosaic_0001>

<llo_original>
// kernel: tpu_custom_call.1
$region0: #{tpu_custom_call.1}
  #allocation0 [shape = 'u32[]', space=smem, size = 0x4, offset = 0x4, fixed_abs, tag = 'smem constant byte address 0x4 - core index']
  #allocation1 [shape = 'u32[72,128]{1,0:T(1,128)}', space=vmem, size = 0x9000, scoped, tag = 'internal scratch']
  %s0 = inlined_call_operand.hbm [shape: f32[8,128], index: 0, kind: input, shape index: {}]
  %s1 = inlined_call_operand.hbm [shape: f32[8,128], index: 1, kind: input, shape index: {}]
  %s2 = inlined_call_operand.hbm [shape: f32[1,8,128], index: 2, kind: output, shape index: {}]
  %s3 = sld [smem:[#allocation0]]
  $region26: #{tpu_custom_call.1} parent=0
    _
  %s5 = ssub.s32 1, %s3
  %s6 = scalar_select 0, %s5, %s3
  $region1: #{tpu_custom_call.1} parent=0
    #allocation2 [shape = 'u8[4096]{0}', space=vmem, size = 0x1000, scoped, tag = 'input window, operand 0, single buffered']
    #allocation3 [shape = 's32[1]{0}', space=sflag, size = 0x4, scoped, tag = 'scoped memory for tpu_custom_call.1']
    #allocation4 [shape = 's32[1]{0}', space=sflag, size = 0x4, scoped, tag = 'scoped memory for tpu_custom_call.1']
    #allocation5 [shape = 'u8[4096]{0}', space=vmem, size = 0x1000, scoped, tag = 'input window, operand 1, single buffered']
    #allocation6 [shape = 's32[1]{0}', space=sflag, size = 0x4, scoped, tag = 'scoped memory for tpu_custom_call.1']
    #allocation7 [shape = 'u8[4096]{0}', space=vmem, size = 0x1000, scoped, tag = 'output window, operand 0, single buffered']
    %7 = vsyncpa [#allocation3], 0
    %8 = vsyncpa [#allocation6], 0
    %9 = vsyncpa [#allocation4], 0
    // Predicated region
    $region2: #{tpu_custom_call.1} parent=1 // pred_check
      _
    $region3: #{tpu_custom_call.1} parent=1 // pred_check_branch
      %11 = sbr.rel (0) target = $region5
    $region4: #{tpu_custom_call.1} parent=1 // pred_region
      %13 = vsyncadd [#allocation3], 0
      %s15 = sshll.u32 %s0, 4
      %s16 = int_to_ptr.hbm [resolvable:$true] %s15
      %s17 = sshll.u32 [#allocation2], 4
      %s18 = int_to_ptr.vmem [resolvable:$true] %s17
      %20 = dma.hbm_to_vmem [thread:$0]  %s16, 128, %s18, [#allocation3]
    $region5: #{tpu_custom_call.1} parent=1 // pred_fallthru
      _
    // Predicated region
    $region6: #{tpu_custom_call.1} parent=1 // pred_check
      _
    $region7: #{tpu_custom_call.1} parent=1 // pred_check_branch
      %22 = sbr.rel (0) target = $region9
    $region8: #{tpu_custom_call.1} parent=1 // pred_region
      %24 = vsyncadd [#allocation6], 0
      %s26 = sshll.u32 %s1, 4
      %s27 = int_to_ptr.hbm [resolvable:$true] %s26
      %s28 = sshll.u32 [#allocation5], 4
      %s29 = int_to_ptr.vmem [resolvable:$true] %s28
      %31 = dma.hbm_to_vmem [thread:$0]  %s27, 128, %s29, [#allocation6]
    $region9: #{tpu_custom_call.1} parent=1 // pred_fallthru
      _
    // Predicated region
    $region10: #{tpu_custom_call.1} parent=1 // pred_check
      _
    $region11: #{tpu_custom_call.1} parent=1 // pred_check_branch
      %33 = sbr.rel (0) target = $region13
    $region12: #{tpu_custom_call.1} parent=1 // pred_region
      %35 = dma.done [#allocation3], 128
    $region13: #{tpu_custom_call.1} parent=1 // pred_fallthru
      _
    // Predicated region
    $region14: #{tpu_custom_call.1} parent=1 // pred_check
      _
    $region15: #{tpu_custom_call.1} parent=1 // pred_check_branch
      %37 = sbr.rel (0) target = $region17
    $region16: #{tpu_custom_call.1} parent=1 // pred_region
      %39 = dma.done [#allocation6], 128
    $region17: #{tpu_custom_call.1} parent=1 // pred_fallthru
      _
    %v40 = vld [vmem:[#allocation2] sm:$0xff]
    %v41 = vld [vmem:[#allocation5] sm:$0xff]
    %v42 = vand.u32 2147483647, %v40
    %v43 = vsub.f32 0.0, %v42
    %v44 = vmul.f32 %v43, 1.442695
    %v45 = vpow.pop %v44
    %v46 = vadd.f32 %v45, 1.0
    %v47 = vrcp.pop %v46
    %v48 = vmul.f32 %v46, %v47
    %v49 = vsub.f32 1.0, %v48
    %v50 = vmul.f32 %v47, %v49
    %v51 = vadd.f32 %v47, %v50
    %vm52 = vweird.f32 %v46
    %vm53 = vweird.f32 %v47
    %vm54 = vmor %vm52, %vm53
    %v55 = vsel %vm54, %v47, %v51
    %v56 = vand.u32 2147483647, %v46
    %vm57 = vcmp.eq.f32.partialorder %v56, 8.507059e+37
    %v58 = vand.u32 %v46, 2147483648
    %v59 = vor.u32 1.1754944e-38, %v58
    %v60 = vsel %vm57, %v59, %v55
    %v61 = vmul.f32 1.0, %v60
    %v62 = vmax.f32 %v40, 0.0
    %v63 = vmul.f32 %v40, %v41
    %v64 = vsub.f32 %v62, %v63
    %v65 = vadd.f32 %v45, 1.0
    %v66 = vlog2.pop %v65
    %v67 = vmul.f32 %v66, 0.6931472
    %v68 = vmul.f32 -0.5, %v45
    %v69 = vadd.f32 %v68, 1.0
    %v70 = vmul.f32 %v69, %v45
    %v71 = vand.u32 2147483647, %v45
    %vm72 = vcmp.lt.f32.partialorder %v71, 0.0004427343
    %v73 = vsel %vm72, %v70, %v67
    %v74 = vadd.f32 %v64, %v73
    %vm75 = vcmp.ge.f32.partialorder %v40, 0.0
    %v76 = vsel %vm75, 1.0, %v45
    %v77 = vmul.f32 %v76, %v61
    %v78 = vmul.f32 %v77, 2.0
    %v79 = vsub.f32 1.0, %v78
    %v80 = vmul.f32 %v41, %v79
    %v81 = vadd.f32 %v77, %v80
    %v82 = vrsqrt.pop %v81
    %v83 = vmul.f32 %v82, %v81
    %v84 = vmul.f32 %v83, %v82
    %v85 = vmul.f32 0.5, %v84
    %v86 = vsub.f32 1.5, %v85
    %v87 = vmul.f32 %v82, %v86
    %v88 = vmul.f32 %v81, %v87
    %vm89 = vcmp.eq.f32.partialorder %v81, inf
    %v90 = vsel %vm89, %v81, %v88
    %vm91 = vcmp.eq.f32.partialorder %v81, 0.0
    %v92 = vand.u32 %v81, 2147483648
    %v93 = vsel %vm91, %v92, %v90
    %v94 = vmul.f32 %v81, %v93
    %v95 = vmul.f32 %v74, %v94
    %v96 = vmul.f32 %v41, -0.5
    %v97 = vadd.f32 %v96, 0.75
    %v98 = vmul.f32 %v95, %v97
    %v99 = vadd.f32 %v98, 0.0
    %100 = vst [vmem:[#allocation7] sm:$0xff] %v99
    // Predicated region
    $region18: #{tpu_custom_call.1} parent=1 // pred_check
      _
    $region19: #{tpu_custom_call.1} parent=1 // pred_check_branch
      %102 = sbr.rel (0) target = $region21
    $region20: #{tpu_custom_call.1} parent=1 // pred_region
      %104 = vsyncadd [#allocation4], 0
      %s106 = sshll.u32 [#allocation7], 4
      %s107 = int_to_ptr.vmem [resolvable:$true] %s106
      %s108 = sshll.u32 %s2, 4
      %s109 = int_to_ptr.hbm [resolvable:$true] %s108
      %111 = dma.vmem_to_hbm [thread:$0]  %s107, 128, %s109, [#allocation4]
    $region21: #{tpu_custom_call.1} parent=1 // pred_fallthru
      _
    // Predicated region
    $region22: #{tpu_custom_call.1} parent=1 // pred_check
      _
    $region23: #{tpu_custom_call.1} parent=1 // pred_check_branch
      %113 = sbr.rel (0) target = $region25
    $region24: #{tpu_custom_call.1} parent=1 // pred_region
      %115 = dma.done [#allocation4], 128
    $region25: #{tpu_custom_call.1} parent=1 // pred_fallthru
      _
    %116 = vsyncpa [#allocation3], 1
    %117 = vsyncpa [#allocation6], 1
    %118 = vsyncpa [#allocation4], 1

</llo_original>
